<compile_context>
chip_gen: v5e
topology: v5e:2x2
jax: 0.10.0
libtpu: 0.0.40
codegen_flags: <defaults>
</compile_context>

<pallas_src>
import jax
import jax.numpy as jnp
from jax.experimental import pallas as pl
from jax.experimental.pallas import tpu as pltpu

_LANE = 128


def _round_up(x: int, m: int) -> int:
    return ((x + m - 1) // m) * m


def _device_kind() -> str:
    try:
        return jax.devices()[0].device_kind.lower()
    except Exception:
        return ""


def _block_budget_bytes(kind: str) -> int:
    # Per-array, per-buffer block budget (double-buffered in + out => 4x this).
    if "v5" in kind:
        return 2 << 20      # v5e: 16 MiB scoped default, ~0.8 TB/s HBM
    if "v6" in kind or "v7" in kind:
        return 4 << 20      # v6e: 32 MiB scoped; v7x: 32 MiB scoped / 64 MiB phys
    return 2 << 20          # unknown generation: be conservative


def _dimension_semantics(n_axes: int, kind: str, row_axis: int = 0):
    sems = [pltpu.PARALLEL] * n_axes
    if "v7" in kind:
        # v7x has 2 TensorCores/chip; plain "parallel" does not guarantee the
        # grid is split across them -- make the row-axis split explicit.
        sems[row_axis] = pltpu.CORE_PARALLEL
    return tuple(sems)


def _sublane(itemsize: int) -> int:
    # Sublane packing: 8 rows f32, 16 rows bf16, 32 rows int8.
    return 8 * max(1, 4 // max(1, itemsize))


def _pick_row_tile(rows: int, max_rows: int, sublane: int) -> int:
    """Largest row tile <= max_rows (multiple of sublane) minimizing tail padding."""
    if rows <= max_rows:
        return rows           # full dim: always legal, no padding
    max_rows = max((max_rows // sublane) * sublane, sublane)

    def waste(t):
        return (-(-rows // t)) * t - rows

    best_t, best_w = max_rows, waste(max_rows)
    t = max_rows - sublane
    lo = max(sublane, max_rows // 2)
    while t >= lo and best_w > 0:
        w = waste(t)
        if w < best_w:
            best_t, best_w = t, w
        t -= sublane
    return best_t


def _chomp_copy_kernel(x_ref, o_ref):
    # Tiled path: shapes match -> the slice is a full-range no-op (pure aligned
    # copy, full-width vst). Small path: statically trims the trailing lanes of
    # the 128-wide input window. Body must stay a pure copy: the boundary block
    # reads chomped/padded lanes that are only discarded by the masked store.
    o_ref[...] = x_ref[:, : o_ref.shape[-1]]


def _chomp2d_tiled(x2: jax.Array, L_out: int, kind: str) -> jax.Array:
    """Lane-dense tiled copy of x2[:, :L_out] (requires L_out >= 128)."""
    rows, L = x2.shape
    item = x2.dtype.itemsize
    budget = _block_budget_bytes(kind)

    # Lane tile: round UP to a multiple of 128 (capped at 2048) so L_out just
    # past a boundary yields one (partially masked) column block, not two.
    lane_t = min(2048, _round_up(L_out, _LANE))
    row_cap = budget // (lane_t * item)
    row_cap = max(32, min(1024, (row_cap // 32) * 32))
    row_t = _pick_row_tile(rows, row_cap, _sublane(item))

    grid = (-(-rows // row_t), -(-L_out // lane_t))
    blk_bytes = row_t * lane_t * item
    vmem_limit = max(2 * (blk_bytes + blk_bytes) + (4 << 20), 32 << 20)

    return pl.pallas_call(
        _chomp_copy_kernel,
        out_shape=jax.ShapeDtypeStruct((rows, L_out), x2.dtype),
        grid=grid,
        # Input blocks sit at the same (row, lane) offsets as the output
        # blocks; the chomp is implicit because the grid only spans the first
        # L_out columns of the wider (rows, L) input.
        in_specs=[pl.BlockSpec((row_t, lane_t), lambda i, j: (i, j))],
        out_specs=pl.BlockSpec((row_t, lane_t), lambda i, j: (i, j)),
        compiler_params=pltpu.CompilerParams(
            dimension_semantics=_dimension_semantics(2, kind),
            vmem_limit_bytes=vmem_limit),
        cost_estimate=pl.CostEstimate(
            flops=0, transcendentals=0,
            bytes_accessed=2 * rows * L_out * item),
    )(x2)


def _chomp2d_small(x2: jax.Array, L_out: int, kind: str) -> jax.Array:
    """Fallback for L_out < 128: minimal lane window, large row slabs."""
    rows, L = x2.shape
    item = x2.dtype.itemsize
    # Read only the first 128 input lanes (or all of them when L < 128)
    # instead of the whole chomped row -- cuts input HBM traffic to the
    # minimum legal tile.
    lane_in = _LANE if L >= _LANE else L
    # Blocks are tiny (< 128 useful lanes), so the kernel is dominated by the
    # fixed per-grid-step overhead: use big row slabs to cut the step count.
    row_cap = (2 << 20) // (lane_in * item)
    row_cap = max(32, min(4096, (row_cap // 32) * 32))
    row_t = _pick_row_tile(rows, row_cap, _sublane(item))

    grid = (-(-rows // row_t),)
    in_blk = row_t * lane_in * item
    out_blk = row_t * L_out * item
    vmem_limit = max(2 * (in_blk + out_blk) + (4 << 20), 32 << 20)

    return pl.pallas_call(
        _chomp_copy_kernel,
        out_shape=jax.ShapeDtypeStruct((rows, L_out), x2.dtype),
        grid=grid,
        in_specs=[pl.BlockSpec((row_t, lane_in), lambda i: (i, 0))],
        out_specs=pl.BlockSpec((row_t, L_out), lambda i: (i, 0)),
        compiler_params=pltpu.CompilerParams(
            dimension_semantics=_dimension_semantics(1, kind),
            vmem_limit_bytes=vmem_limit),
        cost_estimate=pl.CostEstimate(
            flops=0, transcendentals=0,
            bytes_accessed=rows * (lane_in + L_out) * item),
    )(x2)


def chomp1d(x: jax.Array, chomp_size: int) -> jax.Array:
    """Pallas equivalent of Chomp1d(chomp_size)(x) for x of shape (N, C, L)."""
    assert x.ndim == 3, "expected (N, C, L) input"
    N, C, L = x.shape
    # PyTorch's Chomp1d(0) returns an empty tensor (the `:-0` quirk); the TCN
    # use-case always passes chomp_size = (kernel_size - 1) * dilation > 0.
    assert 0 < chomp_size < L, "chomp_size must be in (0, L)"
    L_out = L - chomp_size

    kind = _device_kind()
    x2 = x.reshape(N * C, L)  # free reshape for contiguous row-major (N, C, L)
    if L_out >= _LANE:
        out2 = _chomp2d_tiled(x2, L_out, kind)
    else:
        out2 = _chomp2d_small(x2, L_out, kind)
    return out2.reshape(N, C, L_out)


if __name__ == "__main__":
    key = jax.random.PRNGKey(0)

    # Small case (module-spec shapes): exercises the L_out < 128 fallback.
    N, C, L, chomp = 2, 4, 16, 3
    x = jax.random.normal(key, (N, C, L), dtype=jnp.float32)
    out = jax.block_until_ready(chomp1d(x, chomp))
    ref = x[:, :, :-chomp]
    assert out.shape == (N, C, L - chomp), out.shape
    assert out.dtype == x.dtype
    assert jnp.array_equal(out, ref), "mismatch vs reference slice (small path)"

    # Longer sequence: exercises the lane-dense tiled fast path
    # (L_out >= 128, non-multiple of 128 -> masked boundary column block).
    N2, C2, L2, chomp2 = 2, 8, 640, 3
    x_big = jax.random.normal(jax.random.PRNGKey(0), (N2, C2, L2),
                              dtype=jnp.float32)
    out_big = jax.block_until_ready(chomp1d(x_big, chomp2))
    ref_big = x_big[:, :, :-chomp2]
    assert out_big.shape == (N2, C2, L2 - chomp2), out_big.shape
    assert jnp.array_equal(out_big, ref_big), "mismatch vs reference (tiled path)"

    # Round-up edge case: L_out just past a 128 boundary -> single partially
    # masked column block (checks the lane_t round-UP change).
    N3, C3, L3, chomp3 = 2, 4, 300, 43
    x_mid = jax.random.normal(jax.random.PRNGKey(0), (N3, C3, L3),
                              dtype=jnp.float32)
    out_mid = jax.block_until_ready(chomp1d(x_mid, chomp3))
    ref_mid = x_mid[:, :, :-chomp3]
    assert out_mid.shape == (N3, C3, L3 - chomp3), out_mid.shape
    assert jnp.array_equal(out_mid, ref_mid), "mismatch vs reference (round-up)"

    print("KERNEL_OK")
</pallas_src>

<mosaic_0001>
module attributes {stable_mosaic.version = 11 : i64} {
  func.func @_chomp_copy_kernel(%arg0: i32, %arg1: memref<8x16xf32, #tpu.memory_space<vmem>>, %arg2: memref<8x13xf32, #tpu.memory_space<vmem>>) attributes {dimension_semantics = [#tpu.dimension_semantics<parallel>], iteration_bounds = array<i64: 1>, scalar_prefetch = 0 : i64, scratch_operands = 0 : i64, tpu.core_type = #tpu.core_type<tc>, window_params = [{transform_indices = @transform_0, window_bounds = array<i64: 8, 16>}, {transform_indices = @transform_1, window_bounds = array<i64: 8, 13>}]} {
    %c0 = arith.constant 0 : index
    %c0_0 = arith.constant 0 : index
    %0 = vector.load %arg1[%c0, %c0_0] : memref<8x16xf32, #tpu.memory_space<vmem>>, vector<8x13xf32>
    %c0_1 = arith.constant 0 : index
    %c0_2 = arith.constant 0 : index
    %1 = vector.load %arg2[%c0_1, %c0_2] : memref<8x13xf32, #tpu.memory_space<vmem>>, vector<8x13xf32>
    tpu.vector_store %arg2[%c0_1, %c0_2], %0 {strides = array<i32>} : memref<8x13xf32, #tpu.memory_space<vmem>>, vector<8x13xf32>,
    return
  }
  func.func @transform_0(%arg0: i32) -> (i32, i32) {
    %c0_i32 = arith.constant 0 : i32
    %c0_i32_0 = arith.constant 0 : i32
    return %arg0, %c0_i32 : i32, i32
  }
  func.func @transform_1(%arg0: i32) -> (i32, i32) {
    %c0_i32 = arith.constant 0 : i32
    %c0_i32_0 = arith.constant 0 : i32
    return %arg0, %c0_i32 : i32, i32
  }
}

</mosaic_0001>

<llo_original>
// kernel: tpu_custom_call.1
$region0: #{tpu_custom_call.1}
  #allocation0 [shape = 'u32[]', space=smem, size = 0x4, offset = 0x4, fixed_abs, tag = 'smem constant byte address 0x4 - core index']
  #allocation1 [shape = 'u32[72,128]{1,0:T(1,128)}', space=vmem, size = 0x9000, scoped, tag = 'internal scratch']
  %s0 = inlined_call_operand.hbm [shape: f32[8,16], index: 0, kind: input, shape index: {}]
  %s1 = inlined_call_operand.hbm [shape: f32[8,13], index: 1, kind: output, shape index: {}]
  %s2 = sld [smem:[#allocation0]]
  $region18: #{tpu_custom_call.1} parent=0
    _
  %s4 = ssub.s32 1, %s2
  %s5 = scalar_select 0, %s4, %s2
  $region1: #{tpu_custom_call.1} parent=0
    #allocation2 [shape = 'u8[4096]{0}', space=vmem, size = 0x1000, scoped, tag = 'input window, operand 0, single buffered']
    #allocation3 [shape = 's32[1]{0}', space=sflag, size = 0x4, scoped, tag = 'scoped memory for tpu_custom_call.1']
    #allocation4 [shape = 's32[1]{0}', space=sflag, size = 0x4, scoped, tag = 'scoped memory for tpu_custom_call.1']
    #allocation5 [shape = 'u8[4096]{0}', space=vmem, size = 0x1000, scoped, tag = 'output window, operand 0, single buffered']
    %6 = vsyncpa [#allocation3], 0
    %7 = vsyncpa [#allocation4], 0
    // Predicated region
    $region2: #{tpu_custom_call.1} parent=1 // pred_check
      _
    $region3: #{tpu_custom_call.1} parent=1 // pred_check_branch
      %9 = sbr.rel (0) target = $region5
    $region4: #{tpu_custom_call.1} parent=1 // pred_region
      %11 = vsyncadd [#allocation3], 0
      %s13 = sshll.u32 %s0, 4
      %s14 = int_to_ptr.hbm [resolvable:$true] %s13
      %s15 = sshll.u32 [#allocation2], 4
      %s16 = int_to_ptr.vmem [resolvable:$true] %s15
      %18 = dma.hbm_to_vmem [thread:$0]  %s14, 128, %s16, [#allocation3]
    $region5: #{tpu_custom_call.1} parent=1 // pred_fallthru
      _
    // Predicated region
    $region6: #{tpu_custom_call.1} parent=1 // pred_check
      _
    $region7: #{tpu_custom_call.1} parent=1 // pred_check_branch
      %20 = sbr.rel (0) target = $region9
    $region8: #{tpu_custom_call.1} parent=1 // pred_region
      %22 = dma.done [#allocation3], 128
    $region9: #{tpu_custom_call.1} parent=1 // pred_fallthru
      _
    %v23 = vld [vmem:[#allocation2] sm:$0xff]
    %vm24 = vcmask 105472
    %25 = vst.msk [vmem:[#allocation5] sm:$0xff] %vm24, %v23
    // Predicated region
    $region10: #{tpu_custom_call.1} parent=1 // pred_check
      _
    $region11: #{tpu_custom_call.1} parent=1 // pred_check_branch
      %27 = sbr.rel (0) target = $region13
    $region12: #{tpu_custom_call.1} parent=1 // pred_region
      %29 = vsyncadd [#allocation4], 0
      %s31 = sshll.u32 [#allocation5], 4
      %s32 = int_to_ptr.vmem [resolvable:$true] %s31
      %s33 = sshll.u32 %s1, 4
      %s34 = int_to_ptr.hbm [resolvable:$true] %s33
      %36 = dma.vmem_to_hbm [thread:$0]  %s32, 128, %s34, [#allocation4]
    $region13: #{tpu_custom_call.1} parent=1 // pred_fallthru
      _
    // Predicated region
    $region14: #{tpu_custom_call.1} parent=1 // pred_check
      _
    $region15: #{tpu_custom_call.1} parent=1 // pred_check_branch
      %38 = sbr.rel (0) target = $region17
    $region16: #{tpu_custom_call.1} parent=1 // pred_region
      %40 = dma.done [#allocation4], 128
    $region17: #{tpu_custom_call.1} parent=1 // pred_fallthru
      _
    %41 = vsyncpa [#allocation3], 1
    %42 = vsyncpa [#allocation4], 1

</llo_original>
